<compile_context>
chip_gen: v7x
topology: tpu7x:2x2x1
jax: 0.10.0
libtpu: 0.0.40
codegen_flags: <defaults>
</compile_context>

<pallas_src>
import functools

import jax
import jax.numpy as jnp
import numpy as np
from jax.experimental import pallas as pl
from jax.experimental.pallas import tpu as pltpu

BN_EPS = 1e-5


def _bn_scale_shift(y, gamma, beta, inv_count, C, W):
    """Training-mode BN folded into a per-lane (scale, shift); single pass over y.

    The per-channel batch statistic is obtained by (a) a row reduction over the M
    axis and (b) a circular roll-and-add tree over the W lane-groups (period C),
    which leaves the per-channel sum replicated on every lane.
    """
    stats = jnp.concatenate(
        [jnp.sum(y, axis=0, keepdims=True),        # (1, WC) per-(w, c) sums
         jnp.sum(y * y, axis=0, keepdims=True)],   # (1, WC) per-(w, c) sums of squares
        axis=0)                                    # (2, WC) single stacked operand
    shift = C
    for _ in range(int(np.log2(W))):               # W is asserted power-of-two
        stats = stats + pltpu.roll(stats, shift=shift, axis=1)
        shift *= 2
    mean = stats[0:1, :] * inv_count
    var = stats[1:2, :] * inv_count - mean * mean  # biased variance (BN training mode)
    # TODO(synk): E[y^2]-E[y]^2 is cancellation-prone for |mean| >> std; use a
    # mean-subtracted second pass / Welford partials in the gridded variant.
    scale = gamma * jax.lax.rsqrt(var + BN_EPS)
    return scale, beta - mean * scale


def _basicblock_kernel(x_ref, ma_ref, mb_ref, bna_ref, bnb_ref, out_ref,
                       *, inv_count, C, W):
    # x_ref  : (N, H, W*C)      lane-dense activations (lane index = w*C + c)
    # ma_ref : (3*W*C, W*C)     conv_a banded weights (kh = -1, 0, +1 stacked on K)
    # mb_ref : (3*W*C, W*C)     conv_b banded weights
    # bn*_ref: (2, W*C)         row0 = gamma (tiled over w), row1 = beta (tiled over w)
    # out_ref: (N, H, W*C)
    N, H, WC = x_ref.shape
    zrow = jnp.zeros((N, 1, WC), jnp.float32)

    def conv3x3(a3, m_ref):
        # Three accumulating K=WC matmuls against the kh blocks of the banded weights;
        # H zero-padding is the single zero row in the shifted views.
        prev = jnp.concatenate([zrow, a3[:, :H - 1, :]], axis=1).reshape(N * H, WC)
        curr = a3.reshape(N * H, WC)
        nxt = jnp.concatenate([a3[:, 1:, :], zrow], axis=1).reshape(N * H, WC)
        acc = jnp.dot(prev, m_ref[0:WC, :], preferred_element_type=jnp.float32)
        acc = acc + jnp.dot(curr, m_ref[WC:2 * WC, :], preferred_element_type=jnp.float32)
        acc = acc + jnp.dot(nxt, m_ref[2 * WC:3 * WC, :], preferred_element_type=jnp.float32)
        return acc

    x3 = x_ref[...]
    x_flat = x3.reshape(N * H, WC)

    # ---- conv_a, bn_a + ReLU (BN folded into one FMA, fused with the max)
    y = conv3x3(x3, ma_ref)
    sa, ta = _bn_scale_shift(y, bna_ref[0:1, :], bna_ref[1:2, :], inv_count, C, W)
    y = jnp.maximum(y * sa + ta, 0.0)

    # ---- conv_b, bn_b + identity residual + ReLU (stride=1, downsample=None)
    z = conv3x3(y.reshape(N, H, WC), mb_ref)
    sb, tb = _bn_scale_shift(z, bnb_ref[0:1, :], bnb_ref[1:2, :], inv_count, C, W)
    out = jnp.maximum(x_flat + z * sb + tb, 0.0)
    out_ref[...] = out.reshape(N, H, WC).astype(out_ref.dtype)


def _band_weights(w_oihw, W):
    """PyTorch OIHW 3x3 conv weight -> (3*W*Cin, W*Cout) stacked banded (Toeplitz) matrix.

    Block kh (0..2) implements H-offset kh-1; within a block,
    M[w_in*Cin + ci, w_out*Cout + co] = weight[co, ci, kh, w_in - w_out + 1]
    for |w_in - w_out| <= 1 and 0 otherwise (this also encodes the W zero-padding).
    """
    Cout, Cin = w_oihw.shape[0], w_oihw.shape[1]
    wt = jnp.transpose(w_oihw, (2, 3, 1, 0)).astype(jnp.float32)      # (kh, kw, Cin, Cout)
    w_in = np.arange(W)[None, :, None]
    w_out = np.arange(W)[None, None, :]
    kw = np.arange(3)[:, None, None]
    sel = jnp.asarray((w_in == w_out + kw - 1).astype(np.float32))    # (3, W, W)
    m = jnp.einsum('kab,hkio->haibo', sel, wt)                        # (3, W, Cin, W, Cout)
    return m.reshape(3 * W * Cin, W * Cout)


def resnet_basicblock(x_nchw, wa, ga, ba, wb, gb, bb):
    """x_nchw: (N, Cin, H, W); conv weights OIHW; returns NCHW (same as the nn.Module)."""
    N, Cin, H, W = x_nchw.shape
    Cout = wa.shape[0]
    assert Cin == Cout, "identity residual requires inplanes == planes (stride=1, no downsample)"
    assert W & (W - 1) == 0, "roll-tree group-sum requires power-of-two W"
    WC = W * Cin

    # NCHW -> channels-last (N, H, W*C): channels fastest within an image row, so each
    # row is one lane-dense vector.  NOTE: in a full network this relayout should be
    # done once at network entry/exit and (N, H, W*C) kept as the persistent
    # inter-block layout; a standalone block must accept / return NCHW.
    x = jnp.transpose(x_nchw, (0, 2, 3, 1)).reshape(N, H, WC).astype(jnp.float32)

    ma = _band_weights(wa, W)                                          # (3*WC, WC)
    mb = _band_weights(wb, W)
    bna = jnp.stack([jnp.tile(ga.astype(jnp.float32), W),
                     jnp.tile(ba.astype(jnp.float32), W)])             # (2, WC)
    bnb = jnp.stack([jnp.tile(gb.astype(jnp.float32), W),
                     jnp.tile(bb.astype(jnp.float32), W)])

    vmem = pl.BlockSpec(memory_space=pltpu.MemorySpace.VMEM)
    flops = 2 * 3 * 2 * (N * H) * WC * WC                              # 2 convs x 3 matmuls
    bytes_accessed = 4 * (x.size + ma.size + mb.size + bna.size + bnb.size + N * H * WC)
    out = pl.pallas_call(
        functools.partial(_basicblock_kernel,
                          inv_count=1.0 / float(N * H * W), C=Cin, W=W),
        out_shape=jax.ShapeDtypeStruct((N, H, WC), jnp.float32),
        in_specs=[vmem] * 5,
        out_specs=vmem,
        cost_estimate=pl.CostEstimate(flops=flops, transcendentals=2 * WC,
                                      bytes_accessed=bytes_accessed),
    )(x, ma, mb, bna, bnb)

    return jnp.transpose(out.reshape(N, H, W, Cout), (0, 3, 1, 2))     # -> NCHW


def _reference(x_nchw, wa, ga, ba, wb, gb, bb):
    """Pure-JAX reference mirroring the PyTorch module (training-mode BN)."""
    def conv(x, w):
        return jax.lax.conv_general_dilated(
            x, w, window_strides=(1, 1), padding=((1, 1), (1, 1)),
            dimension_numbers=('NCHW', 'OIHW', 'NCHW'))

    def bn(y, g, b):
        mean = jnp.mean(y, axis=(0, 2, 3), keepdims=True)
        var = jnp.mean((y - mean) ** 2, axis=(0, 2, 3), keepdims=True)
        return ((y - mean) * jax.lax.rsqrt(var + BN_EPS)
                * g.reshape(1, -1, 1, 1) + b.reshape(1, -1, 1, 1))

    y = jax.nn.relu(bn(conv(x_nchw, wa), ga, ba))
    z = bn(conv(y, wb), gb, bb)
    return jax.nn.relu(x_nchw + z)


if __name__ == "__main__":
    # batch=2, inplanes=planes=8, spatial=16x16 (W*C = 128 lanes), stride=1, downsample=None.
    N, C, H, W = 2, 8, 16, 16
    key = jax.random.PRNGKey(0)
    kx, kwa, kwb = jax.random.split(key, 3)

    x = jax.random.normal(kx, (N, C, H, W), dtype=jnp.float32)

    # Deterministic parameter init (conv: He-style normal; BN: gamma=1, beta=0).
    std = float(np.sqrt(2.0 / (3 * 3 * C)))
    wa = jax.random.normal(kwa, (C, C, 3, 3), dtype=jnp.float32) * std
    wb = jax.random.normal(kwb, (C, C, 3, 3), dtype=jnp.float32) * std
    ga = jnp.ones((C,), jnp.float32)
    ba = jnp.zeros((C,), jnp.float32)
    gb = jnp.ones((C,), jnp.float32)
    bb = jnp.zeros((C,), jnp.float32)

    out = jax.block_until_ready(resnet_basicblock(x, wa, ga, ba, wb, gb, bb))
    ref = jax.block_until_ready(_reference(x, wa, ga, ba, wb, gb, bb))
    assert out.shape == (N, C, H, W)
    np.testing.assert_allclose(np.asarray(out), np.asarray(ref), rtol=2e-4, atol=2e-4)

    print("KERNEL_OK")
</pallas_src>

<mosaic_0001>
module attributes {stable_mosaic.version = 11 : i64} {
  func.func @_basicblock_kernel(%arg0: memref<2x16x128xf32, #tpu.memory_space<vmem>>, %arg1: memref<384x128xf32, #tpu.memory_space<vmem>>, %arg2: memref<384x128xf32, #tpu.memory_space<vmem>>, %arg3: memref<2x128xf32, #tpu.memory_space<vmem>>, %arg4: memref<2x128xf32, #tpu.memory_space<vmem>>, %arg5: memref<2x16x128xf32, #tpu.memory_space<vmem>>) attributes {dimension_semantics = [], scalar_prefetch = 0 : i64, scratch_operands = 0 : i64, tpu.core_type = #tpu.core_type<tc>} {
    %cst = arith.constant 0.000000e+00 : f32
    %0 = vector.broadcast %cst : f32 to vector<2x1x128xf32>
    %c0 = arith.constant 0 : index
    %c0_0 = arith.constant 0 : index
    %c0_1 = arith.constant 0 : index
    %1 = vector.load %arg0[%c0, %c0_0, %c0_1] : memref<2x16x128xf32, #tpu.memory_space<vmem>>, vector<2x16x128xf32>
    %2 = vector.shape_cast %1 : vector<2x16x128xf32> to vector<32x128xf32>
    %3 = vector.extract_strided_slice %1 {offsets = [0, 0, 0], sizes = [2, 15, 128], strides = [1, 1, 1]} : vector<2x16x128xf32> to vector<2x15x128xf32>
    %4 = tpu.concatenate %0, %3 in 1 : vector<2x1x128xf32>, vector<2x15x128xf32> -> vector<2x16x128xf32>
    %5 = vector.shape_cast %4 : vector<2x16x128xf32> to vector<32x128xf32>
    %6 = vector.shape_cast %1 : vector<2x16x128xf32> to vector<32x128xf32>
    %7 = vector.extract_strided_slice %1 {offsets = [0, 1, 0], sizes = [2, 15, 128], strides = [1, 1, 1]} : vector<2x16x128xf32> to vector<2x15x128xf32>
    %8 = tpu.concatenate %7, %0 in 1 : vector<2x15x128xf32>, vector<2x1x128xf32> -> vector<2x16x128xf32>
    %9 = vector.shape_cast %8 : vector<2x16x128xf32> to vector<32x128xf32>
    %c0_2 = arith.constant 0 : index
    %c0_3 = arith.constant 0 : index
    %10 = vector.load %arg1[%c0_2, %c0_3] : memref<384x128xf32, #tpu.memory_space<vmem>>, vector<128x128xf32>
    %cst_4 = arith.constant dense<0.000000e+00> : vector<32x128xf32>
    %11 = tpu.matmul %5, %10, %cst_4 {dimension_numbers = #tpu.dot_dimension_numbers<[1], [0], [0], [1], [0, 0, 1, 1], [], []>} : vector<32x128xf32>, vector<128x128xf32>, vector<32x128xf32> -> vector<32x128xf32>
    %c128 = arith.constant 128 : index
    %c0_5 = arith.constant 0 : index
    %12 = vector.load %arg1[%c128, %c0_5] : memref<384x128xf32, #tpu.memory_space<vmem>>, vector<128x128xf32>
    %cst_6 = arith.constant dense<0.000000e+00> : vector<32x128xf32>
    %13 = tpu.matmul %6, %12, %cst_6 {dimension_numbers = #tpu.dot_dimension_numbers<[1], [0], [0], [1], [0, 0, 1, 1], [], []>} : vector<32x128xf32>, vector<128x128xf32>, vector<32x128xf32> -> vector<32x128xf32>
    %14 = arith.addf %11, %13 : vector<32x128xf32>
    %c256 = arith.constant 256 : index
    %c0_7 = arith.constant 0 : index
    %15 = vector.load %arg1[%c256, %c0_7] : memref<384x128xf32, #tpu.memory_space<vmem>>, vector<128x128xf32>
    %cst_8 = arith.constant dense<0.000000e+00> : vector<32x128xf32>
    %16 = tpu.matmul %9, %15, %cst_8 {dimension_numbers = #tpu.dot_dimension_numbers<[1], [0], [0], [1], [0, 0, 1, 1], [], []>} : vector<32x128xf32>, vector<128x128xf32>, vector<32x128xf32> -> vector<32x128xf32>
    %17 = arith.addf %14, %16 : vector<32x128xf32>
    %c0_9 = arith.constant 0 : index
    %c0_10 = arith.constant 0 : index
    %18 = vector.load %arg3[%c0_9, %c0_10] : memref<2x128xf32, #tpu.memory_space<vmem>>, vector<1x128xf32>
    %c1 = arith.constant 1 : index
    %c0_11 = arith.constant 0 : index
    %19 = vector.load %arg3[%c1, %c0_11] : memref<2x128xf32, #tpu.memory_space<vmem>>, vector<1x128xf32>
    %cst_12 = arith.constant dense<0.000000e+00> : vector<128xf32>
    %20 = vector.multi_reduction <add>, %17, %cst_12 [0] : vector<32x128xf32> to vector<128xf32>
    %21 = vector.shape_cast %20 : vector<128xf32> to vector<1x128xf32>
    %22 = arith.mulf %17, %17 : vector<32x128xf32>
    %cst_13 = arith.constant dense<0.000000e+00> : vector<128xf32>
    %23 = vector.multi_reduction <add>, %22, %cst_13 [0] : vector<32x128xf32> to vector<128xf32>
    %24 = vector.shape_cast %23 : vector<128xf32> to vector<1x128xf32>
    %25 = tpu.concatenate %21, %24 in 0 : vector<1x128xf32>, vector<1x128xf32> -> vector<2x128xf32>
    %c8_i32 = arith.constant 8 : i32
    %26 = tpu.dynamic_rotate %25 by %c8_i32 dim 1 : vector<2x128xf32>, i32 -> vector<2x128xf32>
    %27 = arith.addf %25, %26 : vector<2x128xf32>
    %c16_i32 = arith.constant 16 : i32
    %28 = tpu.dynamic_rotate %27 by %c16_i32 dim 1 : vector<2x128xf32>, i32 -> vector<2x128xf32>
    %29 = arith.addf %27, %28 : vector<2x128xf32>
    %c32_i32 = arith.constant 32 : i32
    %30 = tpu.dynamic_rotate %29 by %c32_i32 dim 1 : vector<2x128xf32>, i32 -> vector<2x128xf32>
    %31 = arith.addf %29, %30 : vector<2x128xf32>
    %c64_i32 = arith.constant 64 : i32
    %32 = tpu.dynamic_rotate %31 by %c64_i32 dim 1 : vector<2x128xf32>, i32 -> vector<2x128xf32>
    %33 = arith.addf %31, %32 : vector<2x128xf32>
    %34 = vector.extract_strided_slice %33 {offsets = [0, 0], sizes = [1, 128], strides = [1, 1]} : vector<2x128xf32> to vector<1x128xf32>
    %cst_14 = arith.constant 0.001953125 : f32
    %35 = vector.broadcast %cst_14 : f32 to vector<1x128xf32>
    %36 = arith.mulf %34, %35 : vector<1x128xf32>
    %37 = vector.extract_strided_slice %33 {offsets = [1, 0], sizes = [1, 128], strides = [1, 1]} : vector<2x128xf32> to vector<1x128xf32>
    %cst_15 = arith.constant 0.001953125 : f32
    %38 = vector.broadcast %cst_15 : f32 to vector<1x128xf32>
    %39 = arith.mulf %37, %38 : vector<1x128xf32>
    %40 = arith.mulf %36, %36 : vector<1x128xf32>
    %41 = arith.subf %39, %40 : vector<1x128xf32>
    %cst_16 = arith.constant 9.99999974E-6 : f32
    %42 = vector.broadcast %cst_16 : f32 to vector<1x128xf32>
    %43 = arith.addf %41, %42 : vector<1x128xf32>
    %44 = math.rsqrt %43 : vector<1x128xf32>
    %45 = arith.mulf %18, %44 : vector<1x128xf32>
    %46 = arith.mulf %36, %45 : vector<1x128xf32>
    %47 = arith.subf %19, %46 : vector<1x128xf32>
    %48 = vector.broadcast %45 : vector<1x128xf32> to vector<32x128xf32>
    %49 = arith.mulf %17, %48 : vector<32x128xf32>
    %50 = vector.broadcast %47 : vector<1x128xf32> to vector<32x128xf32>
    %51 = arith.addf %49, %50 : vector<32x128xf32>
    %cst_17 = arith.constant 0.000000e+00 : f32
    %52 = vector.broadcast %cst_17 : f32 to vector<32x128xf32>
    %53 = arith.maximumf %51, %52 : vector<32x128xf32>
    %54 = vector.shape_cast %53 : vector<32x128xf32> to vector<2x16x128xf32>
    %55 = vector.extract_strided_slice %54 {offsets = [0, 0, 0], sizes = [2, 15, 128], strides = [1, 1, 1]} : vector<2x16x128xf32> to vector<2x15x128xf32>
    %56 = tpu.concatenate %0, %55 in 1 : vector<2x1x128xf32>, vector<2x15x128xf32> -> vector<2x16x128xf32>
    %57 = vector.shape_cast %56 : vector<2x16x128xf32> to vector<32x128xf32>
    %58 = vector.shape_cast %54 : vector<2x16x128xf32> to vector<32x128xf32>
    %59 = vector.extract_strided_slice %54 {offsets = [0, 1, 0], sizes = [2, 15, 128], strides = [1, 1, 1]} : vector<2x16x128xf32> to vector<2x15x128xf32>
    %60 = tpu.concatenate %59, %0 in 1 : vector<2x15x128xf32>, vector<2x1x128xf32> -> vector<2x16x128xf32>
    %61 = vector.shape_cast %60 : vector<2x16x128xf32> to vector<32x128xf32>
    %c0_18 = arith.constant 0 : index
    %c0_19 = arith.constant 0 : index
    %62 = vector.load %arg2[%c0_18, %c0_19] : memref<384x128xf32, #tpu.memory_space<vmem>>, vector<128x128xf32>
    %cst_20 = arith.constant dense<0.000000e+00> : vector<32x128xf32>
    %63 = tpu.matmul %57, %62, %cst_20 {dimension_numbers = #tpu.dot_dimension_numbers<[1], [0], [0], [1], [0, 0, 1, 1], [], []>} : vector<32x128xf32>, vector<128x128xf32>, vector<32x128xf32> -> vector<32x128xf32>
    %c128_21 = arith.constant 128 : index
    %c0_22 = arith.constant 0 : index
    %64 = vector.load %arg2[%c128_21, %c0_22] : memref<384x128xf32, #tpu.memory_space<vmem>>, vector<128x128xf32>
    %cst_23 = arith.constant dense<0.000000e+00> : vector<32x128xf32>
    %65 = tpu.matmul %58, %64, %cst_23 {dimension_numbers = #tpu.dot_dimension_numbers<[1], [0], [0], [1], [0, 0, 1, 1], [], []>} : vector<32x128xf32>, vector<128x128xf32>, vector<32x128xf32> -> vector<32x128xf32>
    %66 = arith.addf %63, %65 : vector<32x128xf32>
    %c256_24 = arith.constant 256 : index
    %c0_25 = arith.constant 0 : index
    %67 = vector.load %arg2[%c256_24, %c0_25] : memref<384x128xf32, #tpu.memory_space<vmem>>, vector<128x128xf32>
    %cst_26 = arith.constant dense<0.000000e+00> : vector<32x128xf32>
    %68 = tpu.matmul %61, %67, %cst_26 {dimension_numbers = #tpu.dot_dimension_numbers<[1], [0], [0], [1], [0, 0, 1, 1], [], []>} : vector<32x128xf32>, vector<128x128xf32>, vector<32x128xf32> -> vector<32x128xf32>
    %69 = arith.addf %66, %68 : vector<32x128xf32>
    %c0_27 = arith.constant 0 : index
    %c0_28 = arith.constant 0 : index
    %70 = vector.load %arg4[%c0_27, %c0_28] : memref<2x128xf32, #tpu.memory_space<vmem>>, vector<1x128xf32>
    %c1_29 = arith.constant 1 : index
    %c0_30 = arith.constant 0 : index
    %71 = vector.load %arg4[%c1_29, %c0_30] : memref<2x128xf32, #tpu.memory_space<vmem>>, vector<1x128xf32>
    %cst_31 = arith.constant dense<0.000000e+00> : vector<128xf32>
    %72 = vector.multi_reduction <add>, %69, %cst_31 [0] : vector<32x128xf32> to vector<128xf32>
    %73 = vector.shape_cast %72 : vector<128xf32> to vector<1x128xf32>
    %74 = arith.mulf %69, %69 : vector<32x128xf32>
    %cst_32 = arith.constant dense<0.000000e+00> : vector<128xf32>
    %75 = vector.multi_reduction <add>, %74, %cst_32 [0] : vector<32x128xf32> to vector<128xf32>
    %76 = vector.shape_cast %75 : vector<128xf32> to vector<1x128xf32>
    %77 = tpu.concatenate %73, %76 in 0 : vector<1x128xf32>, vector<1x128xf32> -> vector<2x128xf32>
    %c8_i32_33 = arith.constant 8 : i32
    %78 = tpu.dynamic_rotate %77 by %c8_i32_33 dim 1 : vector<2x128xf32>, i32 -> vector<2x128xf32>
    %79 = arith.addf %77, %78 : vector<2x128xf32>
    %c16_i32_34 = arith.constant 16 : i32
    %80 = tpu.dynamic_rotate %79 by %c16_i32_34 dim 1 : vector<2x128xf32>, i32 -> vector<2x128xf32>
    %81 = arith.addf %79, %80 : vector<2x128xf32>
    %c32_i32_35 = arith.constant 32 : i32
    %82 = tpu.dynamic_rotate %81 by %c32_i32_35 dim 1 : vector<2x128xf32>, i32 -> vector<2x128xf32>
    %83 = arith.addf %81, %82 : vector<2x128xf32>
    %c64_i32_36 = arith.constant 64 : i32
    %84 = tpu.dynamic_rotate %83 by %c64_i32_36 dim 1 : vector<2x128xf32>, i32 -> vector<2x128xf32>
    %85 = arith.addf %83, %84 : vector<2x128xf32>
    %86 = vector.extract_strided_slice %85 {offsets = [0, 0], sizes = [1, 128], strides = [1, 1]} : vector<2x128xf32> to vector<1x128xf32>
    %cst_37 = arith.constant 0.001953125 : f32
    %87 = vector.broadcast %cst_37 : f32 to vector<1x128xf32>
    %88 = arith.mulf %86, %87 : vector<1x128xf32>
    %89 = vector.extract_strided_slice %85 {offsets = [1, 0], sizes = [1, 128], strides = [1, 1]} : vector<2x128xf32> to vector<1x128xf32>
    %cst_38 = arith.constant 0.001953125 : f32
    %90 = vector.broadcast %cst_38 : f32 to vector<1x128xf32>
    %91 = arith.mulf %89, %90 : vector<1x128xf32>
    %92 = arith.mulf %88, %88 : vector<1x128xf32>
    %93 = arith.subf %91, %92 : vector<1x128xf32>
    %cst_39 = arith.constant 9.99999974E-6 : f32
    %94 = vector.broadcast %cst_39 : f32 to vector<1x128xf32>
    %95 = arith.addf %93, %94 : vector<1x128xf32>
    %96 = math.rsqrt %95 : vector<1x128xf32>
    %97 = arith.mulf %70, %96 : vector<1x128xf32>
    %98 = arith.mulf %88, %97 : vector<1x128xf32>
    %99 = arith.subf %71, %98 : vector<1x128xf32>
    %100 = vector.broadcast %97 : vector<1x128xf32> to vector<32x128xf32>
    %101 = arith.mulf %69, %100 : vector<32x128xf32>
    %102 = arith.addf %2, %101 : vector<32x128xf32>
    %103 = vector.broadcast %99 : vector<1x128xf32> to vector<32x128xf32>
    %104 = arith.addf %102, %103 : vector<32x128xf32>
    %cst_40 = arith.constant 0.000000e+00 : f32
    %105 = vector.broadcast %cst_40 : f32 to vector<32x128xf32>
    %106 = arith.maximumf %104, %105 : vector<32x128xf32>
    %107 = vector.shape_cast %106 : vector<32x128xf32> to vector<2x16x128xf32>
    %c0_41 = arith.constant 0 : index
    %c0_42 = arith.constant 0 : index
    %c0_43 = arith.constant 0 : index
    %108 = vector.load %arg5[%c0_41, %c0_42, %c0_43] : memref<2x16x128xf32, #tpu.memory_space<vmem>>, vector<2x16x128xf32>
    tpu.vector_store %arg5[%c0_41, %c0_42, %c0_43], %107 {strides = array<i32>} : memref<2x16x128xf32, #tpu.memory_space<vmem>>, vector<2x16x128xf32>,
    return
  }
}

</mosaic_0001>

<llo_original>
// kernel: tpu_custom_call.1
$region0: #{tpu_custom_call.1}
  #allocation0 [shape = 'u32[]', space=smem, size = 0x4, offset = 0x4, fixed_abs, tag = 'smem constant byte address 0x4 - core index']
  #allocation1 [shape = 'u32[144,128]{1,0:T(1,128)}', space=vmem, size = 0x12000, scoped, tag = 'internal scratch']
  %s0 = inlined_call_operand.hbm [shape: f32[2,16,128], index: 0, kind: input, shape index: {}]
  %s1 = inlined_call_operand.hbm [shape: f32[384,128], index: 1, kind: input, shape index: {}]
  %s2 = inlined_call_operand.hbm [shape: f32[384,128], index: 2, kind: input, shape index: {}]
  %s3 = inlined_call_operand.vmem [shape: f32[2,128], index: 3, kind: input, shape index: {}]
  %s4 = inlined_call_operand.vmem [shape: f32[2,128], index: 4, kind: input, shape index: {}]
  %s5 = inlined_call_operand.hbm [shape: f32[2,16,128], index: 5, kind: output, shape index: {}]
  %s6 = sld [smem:[#allocation0]]
  $region42: #{tpu_custom_call.1} parent=0
    _
  %s8 = ssub.s32 1, %s6
  %s9 = scalar_select 0, %s8, %s6
  $region1: #{tpu_custom_call.1} parent=0
    #allocation2 [shape = 'u8[16384]{0}', space=vmem, size = 0x4000, scoped, tag = 'input window, operand 0, single buffered']
    #allocation3 [shape = 's32[1]{0}', space=sflag, size = 0x4, scoped, tag = 'scoped memory for tpu_custom_call.1']
    #allocation4 [shape = 's32[1]{0}', space=sflag, size = 0x4, scoped, tag = 'scoped memory for tpu_custom_call.1']
    #allocation5 [shape = 'u8[196608]{0}', space=vmem, size = 0x30000, scoped, tag = 'input window, operand 1, single buffered']
    #allocation6 [shape = 's32[1]{0}', space=sflag, size = 0x4, scoped, tag = 'scoped memory for tpu_custom_call.1']
    #allocation7 [shape = 'u8[196608]{0}', space=vmem, size = 0x30000, scoped, tag = 'input window, operand 2, single buffered']
    #allocation8 [shape = 'u8[16384]{0}', space=vmem, size = 0x4000, scoped, tag = 'output window, operand 0, single buffered']
    %10 = vsyncpa [#allocation3], 0
    %11 = vsyncpa [#allocation6], 0
    %12 = vsyncpa [#allocation4], 0
    // Predicated region
    $region2: #{tpu_custom_call.1} parent=1 // pred_check
      _
    $region3: #{tpu_custom_call.1} parent=1 // pred_check_branch
      %14 = sbr.rel (0) target = $region5
    $region4: #{tpu_custom_call.1} parent=1 // pred_region
      %s16 = ssub.s32 512, 512
      %17 = vsyncadd [#allocation3], %s16
      %s18 = sshll.u32 [#allocation2], 4
      %s19 = int_to_ptr.vmem [resolvable:$true] %s18
      %24 = dma.hbm_to_vmem [thread:$0]  %s0, 512, %s19, [#allocation3], 128, 128, 8
    $region5: #{tpu_custom_call.1} parent=1 // pred_fallthru
      _
    // Predicated region
    $region6: #{tpu_custom_call.1} parent=1 // pred_check
      _
    $region7: #{tpu_custom_call.1} parent=1 // pred_check_branch
      %26 = sbr.rel (0) target = $region9
    $region8: #{tpu_custom_call.1} parent=1 // pred_region
      %s28 = ssub.s32 6144, 6144
      %29 = vsyncadd [#allocation6], %s28
      %s30 = sshll.u32 [#allocation5], 4
      %s31 = int_to_ptr.vmem [resolvable:$true] %s30
      %36 = dma.hbm_to_vmem [thread:$0]  %s1, 6144, %s31, [#allocation6], 128, 128, 8
    $region9: #{tpu_custom_call.1} parent=1 // pred_fallthru
      _
    // Predicated region
    $region10: #{tpu_custom_call.1} parent=1 // pred_check
      _
    $region11: #{tpu_custom_call.1} parent=1 // pred_check_branch
      %38 = sbr.rel (0) target = $region13
    $region12: #{tpu_custom_call.1} parent=1 // pred_region
      %s40 = ssub.s32 6144, 6144
      %41 = vsyncadd [#allocation6], %s40
      %s42 = sshll.u32 [#allocation7], 4
      %s43 = int_to_ptr.vmem [resolvable:$true] %s42
      %48 = dma.hbm_to_vmem [thread:$0]  %s2, 6144, %s43, [#allocation6], 128, 128, 8
    $region13: #{tpu_custom_call.1} parent=1 // pred_fallthru
      _
    // Predicated region
    $region14: #{tpu_custom_call.1} parent=1 // pred_check
      _
    $region15: #{tpu_custom_call.1} parent=1 // pred_check_branch
      %50 = sbr.rel (0) target = $region17
    $region16: #{tpu_custom_call.1} parent=1 // pred_region
      _
    $region17: #{tpu_custom_call.1} parent=1 // pred_fallthru
      _
    // Predicated region
    $region18: #{tpu_custom_call.1} parent=1 // pred_check
      _
    $region19: #{tpu_custom_call.1} parent=1 // pred_check_branch
      %52 = sbr.rel (0) target = $region21
    $region20: #{tpu_custom_call.1} parent=1 // pred_region
      _
    $region21: #{tpu_custom_call.1} parent=1 // pred_fallthru
      _
    // Predicated region
    $region22: #{tpu_custom_call.1} parent=1 // pred_check
      _
    $region23: #{tpu_custom_call.1} parent=1 // pred_check_branch
      %54 = sbr.rel (0) target = $region25
    $region24: #{tpu_custom_call.1} parent=1 // pred_region
      %55 = dma.done [#allocation3], 512
    $region25: #{tpu_custom_call.1} parent=1 // pred_fallthru
      _
    // Predicated region
    $region26: #{tpu_custom_call.1} parent=1 // pred_check
      _
    $region27: #{tpu_custom_call.1} parent=1 // pred_check_branch
      %57 = sbr.rel (0) target = $region29
    $region28: #{tpu_custom_call.1} parent=1 // pred_region
      %58 = dma.done [#allocation6], 6144
    $region29: #{tpu_custom_call.1} parent=1 // pred_fallthru
      _
    // Predicated region
    $region30: #{tpu_custom_call.1} parent=1 // pred_check
      _
    $region31: #{tpu_custom_call.1} parent=1 // pred_check_branch
      %60 = sbr.rel (0) target = $region33
    $region32: #{tpu_custom_call.1} parent=1 // pred_region
      %61 = dma.done [#allocation6], 6144
    $region33: #{tpu_custom_call.1} parent=1 // pred_fallthru
      _
    %v62 = vld [vmem:[#allocation2] sm:$0xff]
    %v63 = vld [vmem:[#allocation2 + $0x8] sm:$0xff]
    %v64 = vld [vmem:[#allocation2 + $0x10] sm:$0xff]
    %v65 = vld [vmem:[#allocation2 + $0x18] sm:$0xff]
    %vm70 = vcmask 1040384
    %v71 = vrot.slane %v62, 7
    %v72 = vrot.slane %v63, 7
    %v73 = vsel %vm70, %v71, %v72
    %v74 = vrot.slane %v64, 7
    %v75 = vrot.slane %v65, 7
    %v76 = vsel %vm70, %v74, %v75
    %v81 = vsel %vm70, 0.0, %v71
    %v82 = vsel %vm70, 0.0, %v74
    %vm83 = vcmask 1046528
    %v84 = vrot.slane %v62, 1
    %v85 = vrot.slane %v63, 1
    %v86 = vsel %vm83, %v84, %v85
    %v87 = vrot.slane %v64, 1
    %v88 = vrot.slane %v65, 1
    %v89 = vsel %vm83, %v87, %v88
    %v94 = vsel %vm83, %v85, 0.0
    %v95 = vsel %vm83, %v88, 0.0
    %v96 = vld [vmem:[#allocation5] sm:$0xff]
    %v97 = vld [vmem:[#allocation5 + $0x8] sm:$0xff]
    %v98 = vld [vmem:[#allocation5 + $0x10] sm:$0xff]
    %v99 = vld [vmem:[#allocation5 + $0x18] sm:$0xff]
    %v100 = vld [vmem:[#allocation5 + $0x20] sm:$0xff]
    %v101 = vld [vmem:[#allocation5 + $0x28] sm:$0xff]
    %v102 = vld [vmem:[#allocation5 + $0x30] sm:$0xff]
    %v103 = vld [vmem:[#allocation5 + $0x38] sm:$0xff]
    %v104 = vld [vmem:[#allocation5 + $0x40] sm:$0xff]
    %v105 = vld [vmem:[#allocation5 + $0x48] sm:$0xff]
    %v106 = vld [vmem:[#allocation5 + $0x50] sm:$0xff]
    %v107 = vld [vmem:[#allocation5 + $0x58] sm:$0xff]
    %v108 = vld [vmem:[#allocation5 + $0x60] sm:$0xff]
    %v109 = vld [vmem:[#allocation5 + $0x68] sm:$0xff]
    %v110 = vld [vmem:[#allocation5 + $0x70] sm:$0xff]
    %v111 = vld [vmem:[#allocation5 + $0x78] sm:$0xff]
    %v112 = vld [vmem:[#allocation5 + $0x80] sm:$0xff]
    %v113 = vld [vmem:[#allocation5 + $0x88] sm:$0xff]
    %v114 = vld [vmem:[#allocation5 + $0x90] sm:$0xff]
    %v115 = vld [vmem:[#allocation5 + $0x98] sm:$0xff]
    %v116 = vld [vmem:[#allocation5 + $0xa0] sm:$0xff]
    %v117 = vld [vmem:[#allocation5 + $0xa8] sm:$0xff]
    %v118 = vld [vmem:[#allocation5 + $0xb0] sm:$0xff]
    %v119 = vld [vmem:[#allocation5 + $0xb8] sm:$0xff]
    %v120 = vld [vmem:[#allocation5 + $0xc0] sm:$0xff]
    %v121 = vld [vmem:[#allocation5 + $0xc8] sm:$0xff]
    %v122 = vld [vmem:[#allocation5 + $0xd0] sm:$0xff]
    %v123 = vld [vmem:[#allocation5 + $0xd8] sm:$0xff]
    %v124 = vld [vmem:[#allocation5 + $0xe0] sm:$0xff]
    %v125 = vld [vmem:[#allocation5 + $0xe8] sm:$0xff]
    %v126 = vld [vmem:[#allocation5 + $0xf0] sm:$0xff]
    %v127 = vld [vmem:[#allocation5 + $0xf8] sm:$0xff]
    %128 = vmatprep.subr.mxu0 0.0
    %129 = vmatpush1.msra.mxu0 %v112
    %130 = vmatprep.subr.mxu0 0.0
    %131 = vmatpush1.msra.mxu0 %v113
    %132 = vmatprep.subr.mxu0 0.0
    %133 = vmatpush1.msra.mxu0 %v114
    %134 = vmatprep.subr.mxu0 0.0
    %135 = vmatpush1.msra.mxu0 %v115
    %136 = vmatprep.subr.mxu0 0.0
    %137 = vmatpush1.msra.mxu0 %v116
    %138 = vmatprep.subr.mxu0 0.0
    %139 = vmatpush1.msra.mxu0 %v117
    %140 = vmatprep.subr.mxu0 0.0
    %141 = vmatpush1.msra.mxu0 %v118
    %142 = vmatprep.subr.mxu0 0.0
    %143 = vmatpush1.msra.mxu0 %v119
    %144 = vmatprep.subr.mxu0 0.0
    %145 = vmatpush1.msra.mxu0 %v120
    %146 = vmatprep.subr.mxu0 0.0
    %147 = vmatpush1.msra.mxu0 %v121
    %148 = vmatprep.subr.mxu0 0.0
    %149 = vmatpush1.msra.mxu0 %v122
    %150 = vmatprep.subr.mxu0 0.0
    %151 = vmatpush1.msra.mxu0 %v123
    %152 = vmatprep.subr.mxu0 0.0
    %153 = vmatpush1.msra.mxu0 %v124
    %154 = vmatprep.subr.mxu0 0.0
    %155 = vmatpush1.msra.mxu0 %v125
    %156 = vmatprep.subr.mxu0 0.0
    %157 = vmatpush1.msra.mxu0 %v126
    %158 = vmatprep.subr.mxu0 0.0
    %159 = vmatpush1.msra.mxu0 %v127
    %160 = vmatprep.subr.mxu0 0.0
    %161 = vmatpush1.msra.mxu0 0.0
    %162 = vmatprep.subr.mxu0 0.0
    %163 = vmatpush1.msra.mxu0 0.0
    %164 = vmatprep.subr.mxu0 0.0
    %165 = vmatpush1.msra.mxu0 0.0
    %166 = vmatprep.subr.mxu0 0.0
    %167 = vmatpush1.msra.mxu0 0.0
    %168 = vmatprep.subr.mxu0 0.0
    %169 = vmatpush1.msra.mxu0 0.0
    %170 = vmatprep.subr.mxu0 0.0
    %171 = vmatpush1.msra.mxu0 0.0
    %172 = vmatprep.subr.mxu0 0.0
    %173 = vmatpush1.msra.mxu0 0.0
    %174 = vmatprep.subr.mxu0 0.0
    %175 = vmatpush1.msra.mxu0 0.0
    %176 = vmatprep.subr.mxu0 0.0
    %177 = vmatpush1.msra.mxu0 0.0
    %178 = vmatprep.subr.mxu0 0.0
    %179 = vmatpush1.msra.mxu0 0.0
    %180 = vmatprep.subr.mxu0 0.0
    %181 = vmatpush1.msra.mxu0 0.0
    %182 = vmatprep.subr.mxu0 0.0
    %183 = vmatpush1.msra.mxu0 0.0
    %184 = vmatprep.subr.mxu0 0.0
    %185 = vmatpush1.msra.mxu0 0.0
    %186 = vmatprep.subr.mxu0 0.0
    %187 = vmatpush1.msra.mxu0 0.0
    %188 = vmatprep.subr.mxu0 0.0
    %189 = vmatpush1.msra.mxu0 0.0
    %190 = vmatprep.subr.mxu0 0.0
    %191 = vmatpush1.msra.mxu0 0.0
    %192 = vmatprep.mubr.f32.mxu0 0.0
    %193 = vmatmul.mubr.f32.gmra.mrb[0].mxu0 %v62
    %v194 = vpop.f32.mrb[0].mxu0
    %v195 = vadd.f32 0.0, %v194
    %v196 = vpop.f32.mrb[0].mxu0
    %197 = vmatprep.mubr.f32.mxu0 0.0
    %198 = vmatmul.mubr.f32.gmra.mrb[0].mxu0 %v63
    %v199 = vpop.f32.mrb[0].mxu0
    %v200 = vadd.f32 0.0, %v199
    %v201 = vpop.f32.mrb[0].mxu0
    %202 = vmatprep.mubr.f32.mxu0 0.0
    %203 = vmatmul.mubr.f32.gmra.mrb[0].mxu0 %v64
    %v204 = vpop.f32.mrb[0].mxu0
    %v205 = vadd.f32 0.0, %v204
    %v206 = vpop.f32.mrb[0].mxu0
    %207 = vmatprep.mubr.f32.mxu0 0.0
    %208 = vmatmul.mubr.f32.gmra.mrb[0].mxu0 %v65
    %v209 = vpop.f32.mrb[0].mxu0
    %v210 = vadd.f32 0.0, %v209
    %v211 = vpop.f32.mrb[0].mxu0
    %212 = vdwg.mxu0
    %213 = vmatprep.subr.mxu0 0.0
    %214 = vmatpush1.msra.mxu0 %v96
    %215 = vmatprep.subr.mxu0 0.0
    %216 = vmatpush1.msra.mxu0 %v97
    %217 = vmatprep.subr.mxu0 0.0
    %218 = vmatpush1.msra.mxu0 %v98
    %219 = vmatprep.subr.mxu0 0.0
    %220 = vmatpush1.msra.mxu0 %v99
    %221 = vmatprep.subr.mxu0 0.0
    %222 = vmatpush1.msra.mxu0 %v100
    %223 = vmatprep.subr.mxu0 0.0
    %224 = vmatpush1.msra.mxu0 %v101
    %225 = vmatprep.subr.mxu0 0.0
    %226 = vmatpush1.msra.mxu0 %v102
    %227 = vmatprep.subr.mxu0 0.0
    %228 = vmatpush1.msra.mxu0 %v103
    %229 = vmatprep.subr.mxu0 0.0
    %230 = vmatpush1.msra.mxu0 %v104
    %231 = vmatprep.subr.mxu0 0.0
    %232 = vmatpush1.msra.mxu0 %v105
    %233 = vmatprep.subr.mxu0 0.0
    %234 = vmatpush1.msra.mxu0 %v106
    %235 = vmatprep.subr.mxu0 0.0
    %236 = vmatpush1.msra.mxu0 %v107
    %237 = vmatprep.subr.mxu0 0.0
    %238 = vmatpush1.msra.mxu0 %v108
    %239 = vmatprep.subr.mxu0 0.0
    %240 = vmatpush1.msra.mxu0 %v109
    %241 = vmatprep.subr.mxu0 0.0
    %242 = vmatpush1.msra.mxu0 %v110
    %243 = vmatprep.subr.mxu0 0.0
    %244 = vmatpush1.msra.mxu0 %v111
    %245 = vmatprep.subr.mxu0 0.0
    %246 = vmatpush1.msra.mxu0 0.0
    %247 = vmatprep.subr.mxu0 0.0
    %248 = vmatpush1.msra.mxu0 0.0
    %249 = vmatprep.subr.mxu0 0.0
    %250 = vmatpush1.msra.mxu0 0.0
    %251 = vmatprep.subr.mxu0 0.0
    %252 = vmatpush1.msra.mxu0 0.0
    %253 = vmatprep.subr.mxu0 0.0
    %254 = vmatpush1.msra.mxu0 0.0
    %255 = vmatprep.subr.mxu0 0.0
    %256 = vmatpush1.msra.mxu0 0.0
    %257 = vmatprep.subr.mxu0 0.0
    %258 = vmatpush1.msra.mxu0 0.0
    %259 = vmatprep.subr.mxu0 0.0
    %260 = vmatpush1.msra.mxu0 0.0
    %261 = vmatprep.subr.mxu0 0.0
    %262 = vmatpush1.msra.mxu0 0.0
    %263 = vmatprep.subr.mxu0 0.0
    %264 = vmatpush1.msra.mxu0 0.0
    %265 = vmatprep.subr.mxu0 0.0
    %266 = vmatpush1.msra.mxu0 0.0
    %267 = vmatprep.subr.mxu0 0.0
    %268 = vmatpush1.msra.mxu0 0.0
    %269 = vmatprep.subr.mxu0 0.0
    %270 = vmatpush1.msra.mxu0 0.0
    %271 = vmatprep.subr.mxu0 0.0
    %272 = vmatpush1.msra.mxu0 0.0
    %273 = vmatprep.subr.mxu0 0.0
    %274 = vmatpush1.msra.mxu0 0.0
    %275 = vmatprep.subr.mxu0 0.0
    %276 = vmatpush1.msra.mxu0 0.0
    %277 = vmatprep.mubr.f32.mxu0 0.0
    %278 = vmatmul.mubr.f32.gmra.mrb[0].mxu0 %v81
    %v279 = vpop.f32.mrb[0].mxu0
    %v280 = vadd.f32 %v195, %v279
    %v281 = vpop.f32.mrb[0].mxu0
    %282 = vmatprep.mubr.f32.mxu0 0.0
    %283 = vmatmul.mubr.f32.gmra.mrb[0].mxu0 %v73
    %v284 = vpop.f32.mrb[0].mxu0
    %v285 = vadd.f32 %v200, %v284
    %v286 = vpop.f32.mrb[0].mxu0
    %287 = vmatprep.mubr.f32.mxu0 0.0
    %288 = vmatmul.mubr.f32.gmra.mrb[0].mxu0 %v82
    %v289 = vpop.f32.mrb[0].mxu0
    %v290 = vadd.f32 %v205, %v289
    %v291 = vpop.f32.mrb[0].mxu0
    %292 = vmatprep.mubr.f32.mxu0 0.0
    %293 = vmatmul.mubr.f32.gmra.mrb[0].mxu0 %v76
    %v294 = vpop.f32.mrb[0].mxu0
    %v295 = vadd.f32 %v210, %v294
    %v296 = vpop.f32.mrb[0].mxu0
    %297 = vdwg.mxu0
    %v298 = vld [vmem:[#allocation5 + $0x100] sm:$0xff]
    %v299 = vld [vmem:[#allocation5 + $0x108] sm:$0xff]
    %v300 = vld [vmem:[#allocation5 + $0x110] sm:$0xff]
    %v301 = vld [vmem:[#allocation5 + $0x118] sm:$0xff]
    %v302 = vld [vmem:[#allocation5 + $0x120] sm:$0xff]
    %v303 = vld [vmem:[#allocation5 + $0x128] sm:$0xff]
    %v304 = vld [vmem:[#allocation5 + $0x130] sm:$0xff]
    %v305 = vld [vmem:[#allocation5 + $0x138] sm:$0xff]
    %v306 = vld [vmem:[#allocation5 + $0x140] sm:$0xff]
    %v307 = vld [vmem:[#allocation5 + $0x148] sm:$0xff]
    %v308 = vld [vmem:[#allocation5 + $0x150] sm:$0xff]
    %v309 = vld [vmem:[#allocation5 + $0x158] sm:$0xff]
    %v310 = vld [vmem:[#allocation5 + $0x160] sm:$0xff]
    %v311 = vld [vmem:[#allocation5 + $0x168] sm:$0xff]
    %v312 = vld [vmem:[#allocation5 + $0x170] sm:$0xff]
    %v313 = vld [vmem:[#allocation5 + $0x178] sm:$0xff]
    %314 = vmatprep.subr.mxu0 0.0
    %315 = vmatpush1.msra.mxu0 %v298
    %316 = vmatprep.subr.mxu0 0.0
    %317 = vmatpush1.msra.mxu0 %v299
    %318 = vmatprep.subr.mxu0 0.0
    %319 = vmatpush1.msra.mxu0 %v300
    %320 = vmatprep.subr.mxu0 0.0
    %321 = vmatpush1.msra.mxu0 %v301
    %322 = vmatprep.subr.mxu0 0.0
    %323 = vmatpush1.msra.mxu0 %v302
    %324 = vmatprep.subr.mxu0 0.0
    %325 = vmatpush1.msra.mxu0 %v303
    %326 = vmatprep.subr.mxu0 0.0
    %327 = vmatpush1.msra.mxu0 %v304
    %328 = vmatprep.subr.mxu0 0.0
    %329 = vmatpush1.msra.mxu0 %v305
    %330 = vmatprep.subr.mxu0 0.0
    %331 = vmatpush1.msra.mxu0 %v306
    %332 = vmatprep.subr.mxu0 0.0
    %333 = vmatpush1.msra.mxu0 %v307
    %334 = vmatprep.subr.mxu0 0.0
    %335 = vmatpush1.msra.mxu0 %v308
    %336 = vmatprep.subr.mxu0 0.0
    %337 = vmatpush1.msra.mxu0 %v309
    %338 = vmatprep.subr.mxu0 0.0
    %339 = vmatpush1.msra.mxu0 %v310
    %340 = vmatprep.subr.mxu0 0.0
    %341 = vmatpush1.msra.mxu0 %v311
    %342 = vmatprep.subr.mxu0 0.0
    %343 = vmatpush1.msra.mxu0 %v312
    %344 = vmatprep.subr.mxu0 0.0
    %345 = vmatpush1.msra.mxu0 %v313
    %346 = vmatprep.subr.mxu0 0.0
    %347 = vmatpush1.msra.mxu0 0.0
    %348 = vmatprep.subr.mxu0 0.0
    %349 = vmatpush1.msra.mxu0 0.0
    %350 = vmatprep.subr.mxu0 0.0
    %351 = vmatpush1.msra.mxu0 0.0
    %352 = vmatprep.subr.mxu0 0.0
    %353 = vmatpush1.msra.mxu0 0.0
    %354 = vmatprep.subr.mxu0 0.0
    %355 = vmatpush1.msra.mxu0 0.0
    %356 = vmatprep.subr.mxu0 0.0
    %357 = vmatpush1.msra.mxu0 0.0
    %358 = vmatprep.subr.mxu0 0.0
    %359 = vmatpush1.msra.mxu0 0.0
    %360 = vmatprep.subr.mxu0 0.0
    %361 = vmatpush1.msra.mxu0 0.0
    %362 = vmatprep.subr.mxu0 0.0
    %363 = vmatpush1.msra.mxu0 0.0
    %364 = vmatprep.subr.mxu0 0.0
    %365 = vmatpush1.msra.mxu0 0.0
    %366 = vmatprep.subr.mxu0 0.0
    %367 = vmatpush1.msra.mxu0 0.0
    %368 = vmatprep.subr.mxu0 0.0
    %369 = vmatpush1.msra.mxu0 0.0
    %370 = vmatprep.subr.mxu0 0.0
    %371 = vmatpush1.msra.mxu0 0.0
    %372 = vmatprep.subr.mxu0 0.0
    %373 = vmatpush1.msra.mxu0 0.0
    %374 = vmatprep.subr.mxu0 0.0
    %375 = vmatpush1.msra.mxu0 0.0
    %376 = vmatprep.subr.mxu0 0.0
    %377 = vmatpush1.msra.mxu0 0.0
    %378 = vmatprep.mubr.f32.mxu0 0.0
    %379 = vmatmul.mubr.f32.gmra.mrb[0].mxu0 %v86
    %v380 = vpop.f32.mrb[0].mxu0
    %v381 = vadd.f32 0.0, %v380
    %v382 = vpop.f32.mrb[0].mxu0
    %383 = vmatprep.mubr.f32.mxu0 0.0
    %384 = vmatmul.mubr.f32.gmra.mrb[0].mxu0 %v94
    %v385 = vpop.f32.mrb[0].mxu0
    %v386 = vadd.f32 0.0, %v385
    %v387 = vpop.f32.mrb[0].mxu0
    %388 = vmatprep.mubr.f32.mxu0 0.0
    %389 = vmatmul.mubr.f32.gmra.mrb[0].mxu0 %v89
    %v390 = vpop.f32.mrb[0].mxu0
    %v391 = vadd.f32 0.0, %v390
    %v392 = vpop.f32.mrb[0].mxu0
    %393 = vmatprep.mubr.f32.mxu0 0.0
    %394 = vmatmul.mubr.f32.gmra.mrb[0].mxu0 %v95
    %v395 = vpop.f32.mrb[0].mxu0
    %v396 = vadd.f32 0.0, %v395
    %v397 = vpop.f32.mrb[0].mxu0
    %398 = vdwg.mxu0
    %v399 = vadd.f32 %v280, %v381
    %v400 = vadd.f32 %v285, %v386
    %v401 = vadd.f32 %v290, %v391
    %v402 = vadd.f32 %v295, %v396
    %v403 = vld [vmem:[%s3] sm:$0x1]
    %v404 = vld [vmem:[%s3 + $0x1] sm:$0x1]
    %v405 = vadd.f32 %v399, %v400
    %v406 = vadd.f32 %v405, %v401
    %v407 = vadd.f32 %v406, %v402
    %v408 = vrot.slane %v407, 4
    %v409 = vadd.f32 %v407, %v408
    %v410 = vrot.slane %v409, 2
    %v411 = vadd.f32 %v409, %v410
    %v412 = vrot.slane %v411, 1
    %v413 = vadd.f32 %v411, %v412
    %v414 = vmul.f32 %v399, %v399
    %v415 = vmul.f32 %v400, %v400
    %v416 = vmul.f32 %v401, %v401
    %v417 = vmul.f32 %v402, %v402
    %v418 = vadd.f32 %v414, %v415
    %v419 = vadd.f32 %v418, %v416
    %v420 = vadd.f32 %v419, %v417
    %v421 = vrot.slane %v420, 4
    %v422 = vadd.f32 %v420, %v421
    %v423 = vrot.slane %v422, 2
    %v424 = vadd.f32 %v422, %v423
    %v425 = vrot.slane %v424, 1
    %v426 = vadd.f32 %v424, %v425
    %v427 = vsel %vm70, %v413, %v426
    %428 = vrot.lane.b32.xlu0 %v427, 8
    %v429 = vpop.permute.xlu0 %428
    %v430 = vadd.f32 %v427, %v429
    %431 = vrot.lane.b32.xlu0 %v430, 16
    %v432 = vpop.permute.xlu0 %431
    %v433 = vadd.f32 %v430, %v432
    %434 = vrot.lane.b32.xlu0 %v433, 32
    %v435 = vpop.permute.xlu0 %434
    %v436 = vadd.f32 %v433, %v435
    %437 = vrot.lane.b32.xlu0 %v436, 64
    %v438 = vpop.permute.xlu0 %437
    %v439 = vadd.f32 %v436, %v438
    %v440 = vmul.f32 %v439, 0.001953125
    %v441 = vmul.f32 %v440, %v440
    %v443 = vrot.slane %v441, 7
    %v445 = vsub.f32 %v440, %v443
    %v446 = vadd.f32 %v445, 1e-05
    %v447 = vrsqrt.pop %v446
    %v449 = vrot.slane %v447, 1
    %v451 = vmul.f32 %v403, %v449
    %v452 = vmul.f32 %v440, %v451
    %v453 = vsub.f32 %v404, %v452
    %v454 = vlaneseq
    %v455 = vshrl.u32 %v454, 7
    %v456 = vsub.s32 0, %v455
    %v457 = vrot.slane %v451, %v456
    %v458 = vmul.f32 %v399, %v457
    %v459 = vmul.f32 %v400, %v457
    %v460 = vmul.f32 %v401, %v457
    %v461 = vmul.f32 %v402, %v457
    %v462 = vlaneseq
    %v463 = vshrl.u32 %v462, 7
    %v464 = vsub.s32 0, %v463
    %v465 = vrot.slane %v453, %v464
    %v466 = vadd.f32 %v458, %v465
    %v467 = vadd.f32 %v459, %v465
    %v468 = vadd.f32 %v460, %v465
    %v469 = vadd.f32 %v461, %v465
    %v470 = vmax.f32 %v466, 0.0
    %v471 = vmax.f32 %v467, 0.0
    %v472 = vmax.f32 %v468, 0.0
    %v473 = vmax.f32 %v469, 0.0
    %v478 = vrot.slane %v470, 7
    %v479 = vrot.slane %v471, 7
    %v480 = vsel %vm70, %v478, %v479
    %v481 = vrot.slane %v472, 7
    %v482 = vrot.slane %v473, 7
    %v483 = vsel %vm70, %v481, %v482
    %v488 = vsel %vm70, 0.0, %v478
    %v489 = vsel %vm70, 0.0, %v481
    %v490 = vrot.slane %v470, 1
    %v491 = vrot.slane %v471, 1
    %v492 = vsel %vm83, %v490, %v491
    %v493 = vrot.slane %v472, 1
    %v494 = vrot.slane %v473, 1
    %v495 = vsel %vm83, %v493, %v494
    %v500 = vsel %vm83, %v491, 0.0
    %v501 = vsel %vm83, %v494, 0.0
    %v502 = vld [vmem:[#allocation7] sm:$0xff]
    %v503 = vld [vmem:[#allocation7 + $0x8] sm:$0xff]
    %v504 = vld [vmem:[#allocation7 + $0x10] sm:$0xff]
    %v505 = vld [vmem:[#allocation7 + $0x18] sm:$0xff]
    %v506 = vld [vmem:[#allocation7 + $0x20] sm:$0xff]
    %v507 = vld [vmem:[#allocation7 + $0x28] sm:$0xff]
    %v508 = vld [vmem:[#allocation7 + $0x30] sm:$0xff]
    %v509 = vld [vmem:[#allocation7 + $0x38] sm:$0xff]
    %v510 = vld [vmem:[#allocation7 + $0x40] sm:$0xff]
    %v511 = vld [vmem:[#allocation7 + $0x48] sm:$0xff]
    %v512 = vld [vmem:[#allocation7 + $0x50] sm:$0xff]
    %v513 = vld [vmem:[#allocation7 + $0x58] sm:$0xff]
    %v514 = vld [vmem:[#allocation7 + $0x60] sm:$0xff]
    %v515 = vld [vmem:[#allocation7 + $0x68] sm:$0xff]
    %v516 = vld [vmem:[#allocation7 + $0x70] sm:$0xff]
    %v517 = vld [vmem:[#allocation7 + $0x78] sm:$0xff]
    %v518 = vld [vmem:[#allocation7 + $0x80] sm:$0xff]
    %v519 = vld [vmem:[#allocation7 + $0x88] sm:$0xff]
    %v520 = vld [vmem:[#allocation7 + $0x90] sm:$0xff]
    %v521 = vld [vmem:[#allocation7 + $0x98] sm:$0xff]
    %v522 = vld [vmem:[#allocation7 + $0xa0] sm:$0xff]
    %v523 = vld [vmem:[#allocation7 + $0xa8] sm:$0xff]
    %v524 = vld [vmem:[#allocation7 + $0xb0] sm:$0xff]
    %v525 = vld [vmem:[#allocation7 + $0xb8] sm:$0xff]
    %v526 = vld [vmem:[#allocation7 + $0xc0] sm:$0xff]
    %v527 = vld [vmem:[#allocation7 + $0xc8] sm:$0xff]
    %v528 = vld [vmem:[#allocation7 + $0xd0] sm:$0xff]
    %v529 = vld [vmem:[#allocation7 + $0xd8] sm:$0xff]
    %v530 = vld [vmem:[#allocation7 + $0xe0] sm:$0xff]
    %v531 = vld [vmem:[#allocation7 + $0xe8] sm:$0xff]
    %v532 = vld [vmem:[#allocation7 + $0xf0] sm:$0xff]
    %v533 = vld [vmem:[#allocation7 + $0xf8] sm:$0xff]
    %534 = vmatprep.subr.mxu0 0.0
    %535 = vmatpush1.msra.mxu0 %v518
    %536 = vmatprep.subr.mxu0 0.0
    %537 = vmatpush1.msra.mxu0 %v519
    %538 = vmatprep.subr.mxu0 0.0
    %539 = vmatpush1.msra.mxu0 %v520
    %540 = vmatprep.subr.mxu0 0.0
    %541 = vmatpush1.msra.mxu0 %v521
    %542 = vmatprep.subr.mxu0 0.0
    %543 = vmatpush1.msra.mxu0 %v522
    %544 = vmatprep.subr.mxu0 0.0
    %545 = vmatpush1.msra.mxu0 %v523
    %546 = vmatprep.subr.mxu0 0.0
    %547 = vmatpush1.msra.mxu0 %v524
    %548 = vmatprep.subr.mxu0 0.0
    %549 = vmatpush1.msra.mxu0 %v525
    %550 = vmatprep.subr.mxu0 0.0
    %551 = vmatpush1.msra.mxu0 %v526
    %552 = vmatprep.subr.mxu0 0.0
    %553 = vmatpush1.msra.mxu0 %v527
    %554 = vmatprep.subr.mxu0 0.0
    %555 = vmatpush1.msra.mxu0 %v528
    %556 = vmatprep.subr.mxu0 0.0
    %557 = vmatpush1.msra.mxu0 %v529
    %558 = vmatprep.subr.mxu0 0.0
    %559 = vmatpush1.msra.mxu0 %v530
    %560 = vmatprep.subr.mxu0 0.0
    %561 = vmatpush1.msra.mxu0 %v531
    %562 = vmatprep.subr.mxu0 0.0
    %563 = vmatpush1.msra.mxu0 %v532
    %564 = vmatprep.subr.mxu0 0.0
    %565 = vmatpush1.msra.mxu0 %v533
    %566 = vmatprep.subr.mxu0 0.0
    %567 = vmatpush1.msra.mxu0 0.0
    %568 = vmatprep.subr.mxu0 0.0
    %569 = vmatpush1.msra.mxu0 0.0
    %570 = vmatprep.subr.mxu0 0.0
    %571 = vmatpush1.msra.mxu0 0.0
    %572 = vmatprep.subr.mxu0 0.0
    %573 = vmatpush1.msra.mxu0 0.0
    %574 = vmatprep.subr.mxu0 0.0
    %575 = vmatpush1.msra.mxu0 0.0
    %576 = vmatprep.subr.mxu0 0.0
    %577 = vmatpush1.msra.mxu0 0.0
    %578 = vmatprep.subr.mxu0 0.0
    %579 = vmatpush1.msra.mxu0 0.0
    %580 = vmatprep.subr.mxu0 0.0
    %581 = vmatpush1.msra.mxu0 0.0
    %582 = vmatprep.subr.mxu0 0.0
    %583 = vmatpush1.msra.mxu0 0.0
    %584 = vmatprep.subr.mxu0 0.0
    %585 = vmatpush1.msra.mxu0 0.0
    %586 = vmatprep.subr.mxu0 0.0
    %587 = vmatpush1.msra.mxu0 0.0
    %588 = vmatprep.subr.mxu0 0.0
    %589 = vmatpush1.msra.mxu0 0.0
    %590 = vmatprep.subr.mxu0 0.0
    %591 = vmatpush1.msra.mxu0 0.0
    %592 = vmatprep.subr.mxu0 0.0
    %593 = vmatpush1.msra.mxu0 0.0
    %594 = vmatprep.subr.mxu0 0.0
    %595 = vmatpush1.msra.mxu0 0.0
    %596 = vmatprep.subr.mxu0 0.0
    %597 = vmatpush1.msra.mxu0 0.0
    %598 = vmatprep.mubr.f32.mxu0 0.0
    %599 = vmatmul.mubr.f32.gmra.mrb[0].mxu0 %v470
    %v600 = vpop.f32.mrb[0].mxu0
    %v601 = vadd.f32 0.0, %v600
    %v602 = vpop.f32.mrb[0].mxu0
    %603 = vmatprep.mubr.f32.mxu0 0.0
    %604 = vmatmul.mubr.f32.gmra.mrb[0].mxu0 %v471
    %v605 = vpop.f32.mrb[0].mxu0
    %v606 = vadd.f32 0.0, %v605
    %v607 = vpop.f32.mrb[0].mxu0
    %608 = vmatprep.mubr.f32.mxu0 0.0
    %609 = vmatmul.mubr.f32.gmra.mrb[0].mxu0 %v472
    %v610 = vpop.f32.mrb[0].mxu0
    %v611 = vadd.f32 0.0, %v610
    %v612 = vpop.f32.mrb[0].mxu0
    %613 = vmatprep.mubr.f32.mxu0 0.0
    %614 = vmatmul.mubr.f32.gmra.mrb[0].mxu0 %v473
    %v615 = vpop.f32.mrb[0].mxu0
    %v616 = vadd.f32 0.0, %v615
    %v617 = vpop.f32.mrb[0].mxu0
    %618 = vdwg.mxu0
    %619 = vmatprep.subr.mxu0 0.0
    %620 = vmatpush1.msra.mxu0 %v502
    %621 = vmatprep.subr.mxu0 0.0
    %622 = vmatpush1.msra.mxu0 %v503
    %623 = vmatprep.subr.mxu0 0.0
    %624 = vmatpush1.msra.mxu0 %v504
    %625 = vmatprep.subr.mxu0 0.0
    %626 = vmatpush1.msra.mxu0 %v505
    %627 = vmatprep.subr.mxu0 0.0
    %628 = vmatpush1.msra.mxu0 %v506
    %629 = vmatprep.subr.mxu0 0.0
    %630 = vmatpush1.msra.mxu0 %v507
    %631 = vmatprep.subr.mxu0 0.0
    %632 = vmatpush1.msra.mxu0 %v508
    %633 = vmatprep.subr.mxu0 0.0
    %634 = vmatpush1.msra.mxu0 %v509
    %635 = vmatprep.subr.mxu0 0.0
    %636 = vmatpush1.msra.mxu0 %v510
    %637 = vmatprep.subr.mxu0 0.0
    %638 = vmatpush1.msra.mxu0 %v511
    %639 = vmatprep.subr.mxu0 0.0
    %640 = vmatpush1.msra.mxu0 %v512
    %641 = vmatprep.subr.mxu0 0.0
    %642 = vmatpush1.msra.mxu0 %v513
    %643 = vmatprep.subr.mxu0 0.0
    %644 = vmatpush1.msra.mxu0 %v514
    %645 = vmatprep.subr.mxu0 0.0
    %646 = vmatpush1.msra.mxu0 %v515
    %647 = vmatprep.subr.mxu0 0.0
    %648 = vmatpush1.msra.mxu0 %v516
    %649 = vmatprep.subr.mxu0 0.0
    %650 = vmatpush1.msra.mxu0 %v517
    %651 = vmatprep.subr.mxu0 0.0
    %652 = vmatpush1.msra.mxu0 0.0
    %653 = vmatprep.subr.mxu0 0.0
    %654 = vmatpush1.msra.mxu0 0.0
    %655 = vmatprep.subr.mxu0 0.0
    %656 = vmatpush1.msra.mxu0 0.0
    %657 = vmatprep.subr.mxu0 0.0
    %658 = vmatpush1.msra.mxu0 0.0
    %659 = vmatprep.subr.mxu0 0.0
    %660 = vmatpush1.msra.mxu0 0.0
    %661 = vmatprep.subr.mxu0 0.0
    %662 = vmatpush1.msra.mxu0 0.0
    %663 = vmatprep.subr.mxu0 0.0
    %664 = vmatpush1.msra.mxu0 0.0
    %665 = vmatprep.subr.mxu0 0.0
    %666 = vmatpush1.msra.mxu0 0.0
    %667 = vmatprep.subr.mxu0 0.0
    %668 = vmatpush1.msra.mxu0 0.0
    %669 = vmatprep.subr.mxu0 0.0
    %670 = vmatpush1.msra.mxu0 0.0
    %671 = vmatprep.subr.mxu0 0.0
    %672 = vmatpush1.msra.mxu0 0.0
    %673 = vmatprep.subr.mxu0 0.0
    %674 = vmatpush1.msra.mxu0 0.0
    %675 = vmatprep.subr.mxu0 0.0
    %676 = vmatpush1.msra.mxu0 0.0
    %677 = vmatprep.subr.mxu0 0.0
    %678 = vmatpush1.msra.mxu0 0.0
    %679 = vmatprep.subr.mxu0 0.0
    %680 = vmatpush1.msra.mxu0 0.0
    %681 = vmatprep.subr.mxu0 0.0
    %682 = vmatpush1.msra.mxu0 0.0
    %683 = vmatprep.mubr.f32.mxu0 0.0
    %684 = vmatmul.mubr.f32.gmra.mrb[0].mxu0 %v488
    %v685 = vpop.f32.mrb[0].mxu0
    %v686 = vadd.f32 %v601, %v685
    %v687 = vpop.f32.mrb[0].mxu0
    %688 = vmatprep.mubr.f32.mxu0 0.0
    %689 = vmatmul.mubr.f32.gmra.mrb[0].mxu0 %v480
    %v690 = vpop.f32.mrb[0].mxu0
    %v691 = vadd.f32 %v606, %v690
    %v692 = vpop.f32.mrb[0].mxu0
    %693 = vmatprep.mubr.f32.mxu0 0.0
    %694 = vmatmul.mubr.f32.gmra.mrb[0].mxu0 %v489
    %v695 = vpop.f32.mrb[0].mxu0
    %v696 = vadd.f32 %v611, %v695
    %v697 = vpop.f32.mrb[0].mxu0
    %698 = vmatprep.mubr.f32.mxu0 0.0
    %699 = vmatmul.mubr.f32.gmra.mrb[0].mxu0 %v483
    %v700 = vpop.f32.mrb[0].mxu0
    %v701 = vadd.f32 %v616, %v700
    %v702 = vpop.f32.mrb[0].mxu0
    %703 = vdwg.mxu0
    %v704 = vld [vmem:[#allocation7 + $0x100] sm:$0xff]
    %v705 = vld [vmem:[#allocation7 + $0x108] sm:$0xff]
    %v706 = vld [vmem:[#allocation7 + $0x110] sm:$0xff]
    %v707 = vld [vmem:[#allocation7 + $0x118] sm:$0xff]
    %v708 = vld [vmem:[#allocation7 + $0x120] sm:$0xff]
    %v709 = vld [vmem:[#allocation7 + $0x128] sm:$0xff]
    %v710 = vld [vmem:[#allocation7 + $0x130] sm:$0xff]
    %v711 = vld [vmem:[#allocation7 + $0x138] sm:$0xff]
    %v712 = vld [vmem:[#allocation7 + $0x140] sm:$0xff]
    %v713 = vld [vmem:[#allocation7 + $0x148] sm:$0xff]
    %v714 = vld [vmem:[#allocation7 + $0x150] sm:$0xff]
    %v715 = vld [vmem:[#allocation7 + $0x158] sm:$0xff]
    %v716 = vld [vmem:[#allocation7 + $0x160] sm:$0xff]
    %v717 = vld [vmem:[#allocation7 + $0x168] sm:$0xff]
    %v718 = vld [vmem:[#allocation7 + $0x170] sm:$0xff]
    %v719 = vld [vmem:[#allocation7 + $0x178] sm:$0xff]
    %720 = vmatprep.subr.mxu0 0.0
    %721 = vmatpush1.msra.mxu0 %v704
    %722 = vmatprep.subr.mxu0 0.0
    %723 = vmatpush1.msra.mxu0 %v705
    %724 = vmatprep.subr.mxu0 0.0
    %725 = vmatpush1.msra.mxu0 %v706
    %726 = vmatprep.subr.mxu0 0.0
    %727 = vmatpush1.msra.mxu0 %v707
    %728 = vmatprep.subr.mxu0 0.0
    %729 = vmatpush1.msra.mxu0 %v708
    %730 = vmatprep.subr.mxu0 0.0
    %731 = vmatpush1.msra.mxu0 %v709
    %732 = vmatprep.subr.mxu0 0.0
    %733 = vmatpush1.msra.mxu0 %v710
    %734 = vmatprep.subr.mxu0 0.0
    %735 = vmatpush1.msra.mxu0 %v711
    %736 = vmatprep.subr.mxu0 0.0
    %737 = vmatpush1.msra.mxu0 %v712
    %738 = vmatprep.subr.mxu0 0.0
    %739 = vmatpush1.msra.mxu0 %v713
    %740 = vmatprep.subr.mxu0 0.0
    %741 = vmatpush1.msra.mxu0 %v714
    %742 = vmatprep.subr.mxu0 0.0
    %743 = vmatpush1.msra.mxu0 %v715
    %744 = vmatprep.subr.mxu0 0.0
    %745 = vmatpush1.msra.mxu0 %v716
    %746 = vmatprep.subr.mxu0 0.0
    %747 = vmatpush1.msra.mxu0 %v717
    %748 = vmatprep.subr.mxu0 0.0
    %749 = vmatpush1.msra.mxu0 %v718
    %750 = vmatprep.subr.mxu0 0.0
    %751 = vmatpush1.msra.mxu0 %v719
    %752 = vmatprep.subr.mxu0 0.0
    %753 = vmatpush1.msra.mxu0 0.0
    %754 = vmatprep.subr.mxu0 0.0
    %755 = vmatpush1.msra.mxu0 0.0
    %756 = vmatprep.subr.mxu0 0.0
    %757 = vmatpush1.msra.mxu0 0.0
    %758 = vmatprep.subr.mxu0 0.0
    %759 = vmatpush1.msra.mxu0 0.0
    %760 = vmatprep.subr.mxu0 0.0
    %761 = vmatpush1.msra.mxu0 0.0
    %762 = vmatprep.subr.mxu0 0.0
    %763 = vmatpush1.msra.mxu0 0.0
    %764 = vmatprep.subr.mxu0 0.0
    %765 = vmatpush1.msra.mxu0 0.0
    %766 = vmatprep.subr.mxu0 0.0
    %767 = vmatpush1.msra.mxu0 0.0
    %768 = vmatprep.subr.mxu0 0.0
    %769 = vmatpush1.msra.mxu0 0.0
    %770 = vmatprep.subr.mxu0 0.0
    %771 = vmatpush1.msra.mxu0 0.0
    %772 = vmatprep.subr.mxu0 0.0
    %773 = vmatpush1.msra.mxu0 0.0
    %774 = vmatprep.subr.mxu0 0.0
    %775 = vmatpush1.msra.mxu0 0.0
    %776 = vmatprep.subr.mxu0 0.0
    %777 = vmatpush1.msra.mxu0 0.0
    %778 = vmatprep.subr.mxu0 0.0
    %779 = vmatpush1.msra.mxu0 0.0
    %780 = vmatprep.subr.mxu0 0.0
    %781 = vmatpush1.msra.mxu0 0.0
    %782 = vmatprep.subr.mxu0 0.0
    %783 = vmatpush1.msra.mxu0 0.0
    %784 = vmatprep.mubr.f32.mxu0 0.0
    %785 = vmatmul.mubr.f32.gmra.mrb[0].mxu0 %v492
    %v786 = vpop.f32.mrb[0].mxu0
    %v787 = vadd.f32 0.0, %v786
    %v788 = vpop.f32.mrb[0].mxu0
    %789 = vmatprep.mubr.f32.mxu0 0.0
    %790 = vmatmul.mubr.f32.gmra.mrb[0].mxu0 %v500
    %v791 = vpop.f32.mrb[0].mxu0
    %v792 = vadd.f32 0.0, %v791
    %v793 = vpop.f32.mrb[0].mxu0
    %794 = vmatprep.mubr.f32.mxu0 0.0
    %795 = vmatmul.mubr.f32.gmra.mrb[0].mxu0 %v495
    %v796 = vpop.f32.mrb[0].mxu0
    %v797 = vadd.f32 0.0, %v796
    %v798 = vpop.f32.mrb[0].mxu0
    %799 = vmatprep.mubr.f32.mxu0 0.0
    %800 = vmatmul.mubr.f32.gmra.mrb[0].mxu0 %v501
    %v801 = vpop.f32.mrb[0].mxu0
    %v802 = vadd.f32 0.0, %v801
    %v803 = vpop.f32.mrb[0].mxu0
    %804 = vdwg.mxu0
    %v805 = vadd.f32 %v686, %v787
    %v806 = vadd.f32 %v691, %v792
    %v807 = vadd.f32 %v696, %v797
    %v808 = vadd.f32 %v701, %v802
    %v809 = vld [vmem:[%s4] sm:$0x1]
    %v810 = vld [vmem:[%s4 + $0x1] sm:$0x1]
    %v811 = vadd.f32 %v805, %v806
    %v812 = vadd.f32 %v811, %v807
    %v813 = vadd.f32 %v812, %v808
    %v814 = vrot.slane %v813, 4
    %v815 = vadd.f32 %v813, %v814
    %v816 = vrot.slane %v815, 2
    %v817 = vadd.f32 %v815, %v816
    %v818 = vrot.slane %v817, 1
    %v819 = vadd.f32 %v817, %v818
    %v820 = vmul.f32 %v805, %v805
    %v821 = vmul.f32 %v806, %v806
    %v822 = vmul.f32 %v807, %v807
    %v823 = vmul.f32 %v808, %v808
    %v824 = vadd.f32 %v820, %v821
    %v825 = vadd.f32 %v824, %v822
    %v826 = vadd.f32 %v825, %v823
    %v827 = vrot.slane %v826, 4
    %v828 = vadd.f32 %v826, %v827
    %v829 = vrot.slane %v828, 2
    %v830 = vadd.f32 %v828, %v829
    %v831 = vrot.slane %v830, 1
    %v832 = vadd.f32 %v830, %v831
    %v833 = vsel %vm70, %v819, %v832
    %834 = vrot.lane.b32.xlu0 %v833, 8
    %v835 = vpop.permute.xlu0 %834
    %v836 = vadd.f32 %v833, %v835
    %837 = vrot.lane.b32.xlu0 %v836, 16
    %v838 = vpop.permute.xlu0 %837
    %v839 = vadd.f32 %v836, %v838
    %840 = vrot.lane.b32.xlu0 %v839, 32
    %v841 = vpop.permute.xlu0 %840
    %v842 = vadd.f32 %v839, %v841
    %843 = vrot.lane.b32.xlu0 %v842, 64
    %v844 = vpop.permute.xlu0 %843
    %v845 = vadd.f32 %v842, %v844
    %v846 = vmul.f32 %v845, 0.001953125
    %v847 = vmul.f32 %v846, %v846
    %v849 = vrot.slane %v847, 7
    %v851 = vsub.f32 %v846, %v849
    %v852 = vadd.f32 %v851, 1e-05
    %v853 = vrsqrt.pop %v852
    %v855 = vrot.slane %v853, 1
    %v857 = vmul.f32 %v809, %v855
    %v858 = vmul.f32 %v846, %v857
    %v859 = vsub.f32 %v810, %v858
    %v860 = vlaneseq
    %v861 = vshrl.u32 %v860, 7
    %v862 = vsub.s32 0, %v861
    %v863 = vrot.slane %v857, %v862
    %v864 = vmul.f32 %v805, %v863
    %v865 = vmul.f32 %v806, %v863
    %v866 = vmul.f32 %v807, %v863
    %v867 = vmul.f32 %v808, %v863
    %v868 = vadd.f32 %v62, %v864
    %v869 = vadd.f32 %v63, %v865
    %v870 = vadd.f32 %v64, %v866
    %v871 = vadd.f32 %v65, %v867
    %v872 = vlaneseq
    %v873 = vshrl.u32 %v872, 7
    %v874 = vsub.s32 0, %v873
    %v875 = vrot.slane %v859, %v874
    %v876 = vadd.f32 %v868, %v875
    %v877 = vadd.f32 %v869, %v875
    %v878 = vadd.f32 %v870, %v875
    %v879 = vadd.f32 %v871, %v875
    %v880 = vmax.f32 %v876, 0.0
    %v881 = vmax.f32 %v877, 0.0
    %v882 = vmax.f32 %v878, 0.0
    %v883 = vmax.f32 %v879, 0.0
    %884 = vst [vmem:[#allocation8] sm:$0xff] %v880
    %885 = vst [vmem:[#allocation8 + $0x8] sm:$0xff] %v881
    %886 = vst [vmem:[#allocation8 + $0x10] sm:$0xff] %v882
    %887 = vst [vmem:[#allocation8 + $0x18] sm:$0xff] %v883
    // Predicated region
    $region34: #{tpu_custom_call.1} parent=1 // pred_check
      _
    $region35: #{tpu_custom_call.1} parent=1 // pred_check_branch
      %889 = sbr.rel (0) target = $region37
    $region36: #{tpu_custom_call.1} parent=1 // pred_region
      %s891 = ssub.s32 512, 512
      %892 = vsyncadd [#allocation4], %s891
      %s893 = sshll.u32 [#allocation8], 4
      %s894 = int_to_ptr.vmem [resolvable:$true] %s893
      %899 = dma.vmem_to_hbm [thread:$0]  %s894, 512, %s5, [#allocation4], 128, 128, 8
    $region37: #{tpu_custom_call.1} parent=1 // pred_fallthru
      _
    // Predicated region
    $region38: #{tpu_custom_call.1} parent=1 // pred_check
      _
    $region39: #{tpu_custom_call.1} parent=1 // pred_check_branch
      %901 = sbr.rel (0) target = $region41
    $region40: #{tpu_custom_call.1} parent=1 // pred_region
      %902 = dma.done [#allocation4], 512
    $region41: #{tpu_custom_call.1} parent=1 // pred_fallthru
      _
    %903 = vsyncpa [#allocation3], 1
    %904 = vsyncpa [#allocation6], 1
    %905 = vsyncpa [#allocation4], 1

</llo_original>
